<compile_context>
chip_gen: v7x
topology: tpu7x:2x2x1
jax: 0.10.0
libtpu: 0.0.40
codegen_flags: <defaults>
</compile_context>

<pallas_src>
import functools
import math

import jax
import jax.numpy as jnp
from jax.experimental import pallas as pl
from jax.experimental.pallas import tpu as pltpu


def _round_up(x, m):
    return (x + m - 1) // m * m


def _pick_tk(inter, tk_max):
    """Largest lane-friendly chunk of the intermediate dim that divides it."""
    if inter <= tk_max:
        return inter
    cand = (tk_max // 128) * 128
    while cand >= 128:
        if inter % cand == 0:
            return cand
        cand -= 128
    return inter  # fallback: full intermediate dim


def _ffn_kernel(x_ref, w1_ref, b1_ref, w2_ref, b2_ref, g_ref, beta_ref,
                *refs, eps, compute_dtype, store_intermediates,
                approximate_gelu):
    if store_intermediates:
        ln_ref, fc1_ref, fc2_ref, acc_ref = refs
    else:
        ln_ref, acc_ref = refs
        fc1_ref = fc2_ref = None

    k = pl.program_id(1)

    @pl.when(k == 0)
    def _init():
        acc_ref[...] = jnp.zeros_like(acc_ref)

    # fc1 chunk: x @ W1[:, k-chunk] + b1[k-chunk], then GELU (f32).
    x = x_ref[...]
    h = jnp.dot(x.astype(compute_dtype), w1_ref[...],
                preferred_element_type=jnp.float32)
    h = h + b1_ref[...].astype(jnp.float32)                    # (tm, tk)
    if approximate_gelu:
        h = jax.nn.gelu(h, approximate=True)                   # EUP tanh path
    else:
        h = 0.5 * h * (1.0 + jax.lax.erf(h * (1.0 / math.sqrt(2.0))))

    if fc1_ref is not None:
        fc1_ref[...] = h.astype(fc1_ref.dtype)

    # fc2 partial: accumulate h_chunk @ W2[k-chunk, :] in f32 scratch.
    acc_ref[...] += jnp.dot(h.astype(compute_dtype), w2_ref[...],
                            preferred_element_type=jnp.float32)

    # Epilogue on the last K chunk: bias, residual, LayerNorm.
    @pl.when(k == pl.num_programs(1) - 1)
    def _finalize():
        y = acc_ref[...] + b2_ref[...].astype(jnp.float32)     # (tm, H)
        if fc2_ref is not None:
            fc2_ref[...] = y.astype(fc2_ref.dtype)
        z = y + x_ref[...].astype(jnp.float32)
        mean = jnp.mean(z, axis=-1, keepdims=True)
        zc = z - mean
        var = jnp.mean(zc * zc, axis=-1, keepdims=True)
        norm = zc * jax.lax.rsqrt(var + eps)
        ln_ref[...] = (norm * g_ref[...].astype(jnp.float32)
                       + beta_ref[...].astype(jnp.float32)).astype(ln_ref.dtype)


def feed_forward(hs, params, *, tm=256, tk=2048, eps=1e-5,
                 compute_dtype=jnp.bfloat16, store_intermediates=True,
                 approximate_gelu=False, interpret=False):
    """hs: (B, S, H). Returns dict mirroring the PyTorch module's output."""
    B, S, H = hs.shape
    M = B * S
    I = params["w1"].shape[1]  # 4*H

    x2d = hs.reshape(M, H)

    # Row tiling: clamp tile to the (padded) problem, pad ragged M with zeros.
    tm_eff = min(tm, _round_up(max(M, 1), 8))
    Mp = _round_up(M, tm_eff)
    if Mp != M:
        x2d = jnp.pad(x2d, ((0, Mp - M), (0, 0)))

    # Intermediate-dim (reduction) tiling.
    tk_eff = _pick_tk(I, tk)
    nk = I // tk_eff

    # Cast weights to the MXU compute dtype once, outside the kernel.
    w1 = params["w1"].astype(compute_dtype)
    w2 = params["w2"].astype(compute_dtype)
    b1 = params["b1"].astype(jnp.float32)
    b2 = params["b2"].astype(jnp.float32)
    gamma = params["gamma"].astype(jnp.float32)
    beta = params["beta"].astype(jnp.float32)

    out_dtype = hs.dtype
    kernel = functools.partial(
        _ffn_kernel, eps=eps, compute_dtype=compute_dtype,
        store_intermediates=store_intermediates,
        approximate_gelu=approximate_gelu)

    in_specs = [
        pl.BlockSpec((tm_eff, H), lambda i, k: (i, 0)),    # x rows (revisited over k)
        pl.BlockSpec((H, tk_eff), lambda i, k: (0, k)),    # W1 chunk
        pl.BlockSpec((1, tk_eff), lambda i, k: (0, k)),    # b1 chunk
        pl.BlockSpec((tk_eff, H), lambda i, k: (k, 0)),    # W2 chunk
        pl.BlockSpec((1, H), lambda i, k: (0, 0)),         # b2
        pl.BlockSpec((1, H), lambda i, k: (0, 0)),         # ln gamma
        pl.BlockSpec((1, H), lambda i, k: (0, 0)),         # ln beta
    ]
    out_specs = [pl.BlockSpec((tm_eff, H), lambda i, k: (i, 0))]      # ln output
    out_shape = [jax.ShapeDtypeStruct((Mp, H), out_dtype)]
    if store_intermediates:
        out_specs += [
            pl.BlockSpec((tm_eff, tk_eff), lambda i, k: (i, k)),      # fc1 (post-gelu)
            pl.BlockSpec((tm_eff, H), lambda i, k: (i, 0)),           # fc2
        ]
        out_shape += [
            jax.ShapeDtypeStruct((Mp, I), out_dtype),
            jax.ShapeDtypeStruct((Mp, H), out_dtype),
        ]

    grid_spec = pltpu.PrefetchScalarGridSpec(
        num_scalar_prefetch=0,
        grid=(Mp // tm_eff, nk),
        in_specs=in_specs,
        out_specs=out_specs,
        scratch_shapes=[pltpu.VMEM((tm_eff, H), jnp.float32)],
    )

    # Explicit VMEM budget (double-buffered streamed chunks + resident tiles).
    wb = jnp.dtype(compute_dtype).itemsize
    ob = jnp.dtype(out_dtype).itemsize
    xb = jnp.dtype(hs.dtype).itemsize
    vmem_est = (
        2 * (H * tk_eff + tk_eff * H) * wb        # W1/W2 chunks (2 buffers)
        + 2 * tk_eff * 4                          # b1 chunk
        + 2 * tm_eff * H * xb                     # x tile
        + 2 * tm_eff * H * ob * (2 if store_intermediates else 1)   # ln (+fc2)
        + (2 * tm_eff * tk_eff * ob if store_intermediates else 0)  # fc1 tile
        + 3 * 2 * H * 4                           # b2 / gamma / beta
        + tm_eff * H * 4                          # f32 accumulator scratch
    )
    vmem_limit = int(min(max(int(vmem_est * 1.5), 32 * 1024 * 1024),
                         100 * 1024 * 1024))

    flops = 4 * Mp * H * I                        # two matmuls, 2*M*H*I each
    transcendentals = Mp * I                      # erf / tanh over fc1 surface
    bytes_accessed = (Mp * H * xb + (H * I + I * H) * wb + (I + 3 * H) * 4
                      + Mp * H * ob
                      + (Mp * (I + H) * ob if store_intermediates else 0))

    outs = pl.pallas_call(
        kernel,
        grid_spec=grid_spec,
        out_shape=out_shape,
        compiler_params=pltpu.CompilerParams(
            dimension_semantics=("parallel", "arbitrary"),
            vmem_limit_bytes=vmem_limit),
        cost_estimate=pl.CostEstimate(flops=flops,
                                      transcendentals=transcendentals,
                                      bytes_accessed=bytes_accessed),
        interpret=interpret,
    )(x2d, w1, b1, w2, b2, gamma, beta)

    result = {"input": hs, "output": outs[0][:M].reshape(B, S, H)}
    if store_intermediates:
        result["fc1_output"] = outs[1][:M].reshape(B, S, I)
        result["fc2_output"] = outs[2][:M].reshape(B, S, H)
    return result


def init_params(key, hidden_size):
    """Deterministic synthetic params. Linear weights stored as (in, out)."""
    inter = 4 * hidden_size
    k1, k2, k3, k4 = jax.random.split(key, 4)
    s1 = 1.0 / math.sqrt(hidden_size)
    s2 = 1.0 / math.sqrt(inter)
    return {
        "w1": jax.random.uniform(k1, (hidden_size, inter), jnp.float32, -s1, s1),
        "b1": jax.random.uniform(k2, (1, inter), jnp.float32, -s1, s1),
        "w2": jax.random.uniform(k3, (inter, hidden_size), jnp.float32, -s2, s2),
        "b2": jax.random.uniform(k4, (1, hidden_size), jnp.float32, -s2, s2),
        "gamma": jnp.ones((1, hidden_size), jnp.float32),
        "beta": jnp.zeros((1, hidden_size), jnp.float32),
    }


def _reference(hs, params, eps=1e-5):
    x = hs
    h = jnp.einsum("bsh,hi->bsi", x, params["w1"]) + params["b1"][0]
    h = jax.nn.gelu(h, approximate=False)
    y = jnp.einsum("bsi,ih->bsh", h, params["w2"]) + params["b2"][0]
    z = y + x
    mean = jnp.mean(z, axis=-1, keepdims=True)
    var = jnp.mean((z - mean) ** 2, axis=-1, keepdims=True)
    out = (z - mean) * jax.lax.rsqrt(var + eps) * params["gamma"][0] + params["beta"][0]
    return out, h, y


if __name__ == "__main__":
    key = jax.random.PRNGKey(0)
    k_x, k_p = jax.random.split(key)

    B, S, H = 2, 8, 32   # hidden_size=32, intermediate_size = 4*32 = 128
    hs = jax.random.normal(k_x, (B, S, H), dtype=jnp.float32)
    params = init_params(k_p, H)

    ref_out, ref_fc1, ref_fc2 = _reference(hs, params)

    # Exact-precision path (f32 MXU operands): tight match to the reference.
    out_f32 = feed_forward(hs, params, compute_dtype=jnp.float32)
    jax.block_until_ready(out_f32)
    assert jnp.allclose(out_f32["output"], ref_out, atol=1e-4, rtol=1e-4)
    assert jnp.allclose(out_f32["fc1_output"], ref_fc1, atol=1e-4, rtol=1e-4)
    assert jnp.allclose(out_f32["fc2_output"], ref_fc2, atol=1e-4, rtol=1e-4)
    assert out_f32["output"].shape == (B, S, H)

    # Default fast path (bf16 operands, f32 accumulation/LN): looser tolerance.
    out_bf16 = feed_forward(hs, params)
    jax.block_until_ready(out_bf16)
    assert jnp.allclose(out_bf16["output"], ref_out, atol=8e-2, rtol=8e-2)
    assert jnp.allclose(out_bf16["fc2_output"], ref_fc2, atol=8e-2, rtol=8e-2)

    print("KERNEL_OK")
</pallas_src>

<mosaic_0001>
module attributes {stable_mosaic.version = 11 : i64} {
  func.func @_ffn_kernel(%arg0: i32, %arg1: i32, %arg2: memref<16x32xf32, #tpu.memory_space<vmem>>, %arg3: memref<32x128xf32, #tpu.memory_space<vmem>>, %arg4: memref<1x128xf32, #tpu.memory_space<vmem>>, %arg5: memref<128x32xf32, #tpu.memory_space<vmem>>, %arg6: memref<1x32xf32, #tpu.memory_space<vmem>>, %arg7: memref<1x32xf32, #tpu.memory_space<vmem>>, %arg8: memref<1x32xf32, #tpu.memory_space<vmem>>, %arg9: memref<16x32xf32, #tpu.memory_space<vmem>>, %arg10: memref<16x128xf32, #tpu.memory_space<vmem>>, %arg11: memref<16x32xf32, #tpu.memory_space<vmem>>, %arg12: memref<16x32xf32, #tpu.memory_space<vmem>>) attributes {dimension_semantics = [#tpu.dimension_semantics<parallel>, #tpu.dimension_semantics<arbitrary>], iteration_bounds = array<i64: 1, 1>, scalar_prefetch = 0 : i64, scratch_operands = 1 : i64, tpu.core_type = #tpu.core_type<tc>, window_params = [{transform_indices = @transform_0, window_bounds = array<i64: 16, 32>}, {transform_indices = @transform_1, window_bounds = array<i64: 32, 128>}, {transform_indices = @transform_2, window_bounds = array<i64: 1, 128>}, {transform_indices = @transform_3, window_bounds = array<i64: 128, 32>}, {pipeline_mode = #tpu.pipeline_mode<synchronous>, transform_indices = @transform_4, window_bounds = array<i64: 1, 32>}, {pipeline_mode = #tpu.pipeline_mode<synchronous>, transform_indices = @transform_5, window_bounds = array<i64: 1, 32>}, {pipeline_mode = #tpu.pipeline_mode<synchronous>, transform_indices = @transform_6, window_bounds = array<i64: 1, 32>}, {transform_indices = @transform_7, window_bounds = array<i64: 16, 32>}, {transform_indices = @transform_8, window_bounds = array<i64: 16, 128>}, {transform_indices = @transform_9, window_bounds = array<i64: 16, 32>}]} {
    %c0_i32 = arith.constant 0 : i32
    %0 = arith.cmpi eq, %arg1, %c0_i32 : i32
    %1 = arith.extui %0 : i1 to i32
    %c0_i32_0 = arith.constant 0 : i32
    %2 = arith.cmpi ne, %1, %c0_i32_0 : i32
    scf.if %2 {
      %cst_20 = arith.constant 0.000000e+00 : f32
      %26 = vector.broadcast %cst_20 : f32 to vector<16x32xf32>
      %c0_21 = arith.constant 0 : index
      %c0_22 = arith.constant 0 : index
      %27 = vector.load %arg12[%c0_21, %c0_22] : memref<16x32xf32, #tpu.memory_space<vmem>>, vector<16x32xf32>
      tpu.vector_store %arg12[%c0_21, %c0_22], %26 {strides = array<i32>} : memref<16x32xf32, #tpu.memory_space<vmem>>, vector<16x32xf32>,
    } else {
    }
    %c0 = arith.constant 0 : index
    %c0_1 = arith.constant 0 : index
    %3 = vector.load %arg2[%c0, %c0_1] : memref<16x32xf32, #tpu.memory_space<vmem>>, vector<16x32xf32>
    %c0_2 = arith.constant 0 : index
    %c0_3 = arith.constant 0 : index
    %4 = vector.load %arg3[%c0_2, %c0_3] : memref<32x128xf32, #tpu.memory_space<vmem>>, vector<32x128xf32>
    %cst = arith.constant dense<0.000000e+00> : vector<16x128xf32>
    %5 = tpu.matmul %3, %4, %cst {dimension_numbers = #tpu.dot_dimension_numbers<[1], [0], [0], [1], [0, 0, 1, 1], [], []>} : vector<16x32xf32>, vector<32x128xf32>, vector<16x128xf32> -> vector<16x128xf32>
    %c0_4 = arith.constant 0 : index
    %c0_5 = arith.constant 0 : index
    %6 = vector.load %arg4[%c0_4, %c0_5] : memref<1x128xf32, #tpu.memory_space<vmem>>, vector<1x128xf32>
    %7 = vector.broadcast %6 : vector<1x128xf32> to vector<16x128xf32>
    %8 = arith.addf %5, %7 : vector<16x128xf32>
    %cst_6 = arith.constant 5.000000e-01 : f32
    %9 = vector.broadcast %cst_6 : f32 to vector<16x128xf32>
    %10 = arith.mulf %9, %8 : vector<16x128xf32>
    %cst_7 = arith.constant 0.707106769 : f32
    %11 = vector.broadcast %cst_7 : f32 to vector<16x128xf32>
    %12 = arith.mulf %8, %11 : vector<16x128xf32>
    %13 = math.erf %12 : vector<16x128xf32>
    %cst_8 = arith.constant 1.000000e+00 : f32
    %14 = vector.broadcast %cst_8 : f32 to vector<16x128xf32>
    %15 = arith.addf %14, %13 : vector<16x128xf32>
    %16 = arith.mulf %10, %15 : vector<16x128xf32>
    %c0_9 = arith.constant 0 : index
    %c0_10 = arith.constant 0 : index
    %17 = vector.load %arg10[%c0_9, %c0_10] : memref<16x128xf32, #tpu.memory_space<vmem>>, vector<16x128xf32>
    tpu.vector_store %arg10[%c0_9, %c0_10], %16 {strides = array<i32>} : memref<16x128xf32, #tpu.memory_space<vmem>>, vector<16x128xf32>,
    %c0_11 = arith.constant 0 : index
    %c0_12 = arith.constant 0 : index
    %18 = vector.load %arg12[%c0_11, %c0_12] : memref<16x32xf32, #tpu.memory_space<vmem>>, vector<16x32xf32>
    %c0_13 = arith.constant 0 : index
    %c0_14 = arith.constant 0 : index
    %19 = vector.load %arg5[%c0_13, %c0_14] : memref<128x32xf32, #tpu.memory_space<vmem>>, vector<128x32xf32>
    %cst_15 = arith.constant dense<0.000000e+00> : vector<16x32xf32>
    %20 = tpu.matmul %16, %19, %cst_15 {dimension_numbers = #tpu.dot_dimension_numbers<[1], [0], [0], [1], [0, 0, 1, 1], [], []>} : vector<16x128xf32>, vector<128x32xf32>, vector<16x32xf32> -> vector<16x32xf32>
    %21 = arith.addf %18, %20 : vector<16x32xf32>
    %c0_16 = arith.constant 0 : index
    %c0_17 = arith.constant 0 : index
    %22 = vector.load %arg12[%c0_16, %c0_17] : memref<16x32xf32, #tpu.memory_space<vmem>>, vector<16x32xf32>
    tpu.vector_store %arg12[%c0_16, %c0_17], %21 {strides = array<i32>} : memref<16x32xf32, #tpu.memory_space<vmem>>, vector<16x32xf32>,
    %c0_i32_18 = arith.constant 0 : i32
    %23 = arith.cmpi eq, %arg1, %c0_i32_18 : i32
    %24 = arith.extui %23 : i1 to i32
    %c0_i32_19 = arith.constant 0 : i32
    %25 = arith.cmpi ne, %24, %c0_i32_19 : i32
    scf.if %25 {
      %c0_20 = arith.constant 0 : index
      %c0_21 = arith.constant 0 : index
      %26 = vector.load %arg12[%c0_20, %c0_21] : memref<16x32xf32, #tpu.memory_space<vmem>>, vector<16x32xf32>
      %c0_22 = arith.constant 0 : index
      %c0_23 = arith.constant 0 : index
      %27 = vector.load %arg6[%c0_22, %c0_23] : memref<1x32xf32, #tpu.memory_space<vmem>>, vector<1x32xf32>
      %28 = vector.broadcast %27 : vector<1x32xf32> to vector<16x32xf32>
      %29 = arith.addf %26, %28 : vector<16x32xf32>
      %c0_24 = arith.constant 0 : index
      %c0_25 = arith.constant 0 : index
      %30 = vector.load %arg11[%c0_24, %c0_25] : memref<16x32xf32, #tpu.memory_space<vmem>>, vector<16x32xf32>
      tpu.vector_store %arg11[%c0_24, %c0_25], %29 {strides = array<i32>} : memref<16x32xf32, #tpu.memory_space<vmem>>, vector<16x32xf32>,
      %c0_26 = arith.constant 0 : index
      %c0_27 = arith.constant 0 : index
      %31 = vector.load %arg2[%c0_26, %c0_27] : memref<16x32xf32, #tpu.memory_space<vmem>>, vector<16x32xf32>
      %32 = arith.addf %29, %31 : vector<16x32xf32>
      %cst_28 = arith.constant dense<0.000000e+00> : vector<16xf32>
      %33 = vector.multi_reduction <add>, %32, %cst_28 [1] : vector<16x32xf32> to vector<16xf32>
      %34 = vector.shape_cast %33 : vector<16xf32> to vector<16x1xf32>
      %cst_29 = arith.constant 3.200000e+01 : f32
      %35 = vector.broadcast %cst_29 : f32 to vector<16x1xf32>
      %36 = arith.divf %34, %35 : vector<16x1xf32>
      %37 = vector.broadcast %36 : vector<16x1xf32> to vector<16x32xf32>
      %38 = arith.subf %32, %37 : vector<16x32xf32>
      %39 = arith.mulf %38, %38 : vector<16x32xf32>
      %cst_30 = arith.constant dense<0.000000e+00> : vector<16xf32>
      %40 = vector.multi_reduction <add>, %39, %cst_30 [1] : vector<16x32xf32> to vector<16xf32>
      %41 = vector.shape_cast %40 : vector<16xf32> to vector<16x1xf32>
      %cst_31 = arith.constant 3.200000e+01 : f32
      %42 = vector.broadcast %cst_31 : f32 to vector<16x1xf32>
      %43 = arith.divf %41, %42 : vector<16x1xf32>
      %cst_32 = arith.constant 9.99999974E-6 : f32
      %44 = vector.broadcast %cst_32 : f32 to vector<16x1xf32>
      %45 = arith.addf %43, %44 : vector<16x1xf32>
      %46 = math.rsqrt %45 : vector<16x1xf32>
      %47 = vector.broadcast %46 : vector<16x1xf32> to vector<16x32xf32>
      %48 = arith.mulf %38, %47 : vector<16x32xf32>
      %c0_33 = arith.constant 0 : index
      %c0_34 = arith.constant 0 : index
      %49 = vector.load %arg7[%c0_33, %c0_34] : memref<1x32xf32, #tpu.memory_space<vmem>>, vector<1x32xf32>
      %50 = vector.broadcast %49 : vector<1x32xf32> to vector<16x32xf32>
      %51 = arith.mulf %48, %50 : vector<16x32xf32>
      %c0_35 = arith.constant 0 : index
      %c0_36 = arith.constant 0 : index
      %52 = vector.load %arg8[%c0_35, %c0_36] : memref<1x32xf32, #tpu.memory_space<vmem>>, vector<1x32xf32>
      %53 = vector.broadcast %52 : vector<1x32xf32> to vector<16x32xf32>
      %54 = arith.addf %51, %53 : vector<16x32xf32>
      %c0_37 = arith.constant 0 : index
      %c0_38 = arith.constant 0 : index
      %55 = vector.load %arg9[%c0_37, %c0_38] : memref<16x32xf32, #tpu.memory_space<vmem>>, vector<16x32xf32>
      tpu.vector_store %arg9[%c0_37, %c0_38], %54 {strides = array<i32>} : memref<16x32xf32, #tpu.memory_space<vmem>>, vector<16x32xf32>,
    } else {
    }
    return
  }
  func.func @transform_0(%arg0: i32, %arg1: i32) -> (i32, i32) {
    %c0_i32 = arith.constant 0 : i32
    %c0_i32_0 = arith.constant 0 : i32
    return %arg0, %c0_i32 : i32, i32
  }
  func.func @transform_1(%arg0: i32, %arg1: i32) -> (i32, i32) {
    %c0_i32 = arith.constant 0 : i32
    %c0_i32_0 = arith.constant 0 : i32
    return %c0_i32, %arg1 : i32, i32
  }
  func.func @transform_2(%arg0: i32, %arg1: i32) -> (i32, i32) {
    %c0_i32 = arith.constant 0 : i32
    %c0_i32_0 = arith.constant 0 : i32
    return %c0_i32, %arg1 : i32, i32
  }
  func.func @transform_3(%arg0: i32, %arg1: i32) -> (i32, i32) {
    %c0_i32 = arith.constant 0 : i32
    %c0_i32_0 = arith.constant 0 : i32
    return %arg1, %c0_i32 : i32, i32
  }
  func.func @transform_4(%arg0: i32, %arg1: i32) -> (i32, i32) {
    %c0_i32 = arith.constant 0 : i32
    %c0_i32_0 = arith.constant 0 : i32
    %c0_i32_1 = arith.constant 0 : i32
    return %c0_i32, %c0_i32_0 : i32, i32
  }
  func.func @transform_5(%arg0: i32, %arg1: i32) -> (i32, i32) {
    %c0_i32 = arith.constant 0 : i32
    %c0_i32_0 = arith.constant 0 : i32
    %c0_i32_1 = arith.constant 0 : i32
    return %c0_i32, %c0_i32_0 : i32, i32
  }
  func.func @transform_6(%arg0: i32, %arg1: i32) -> (i32, i32) {
    %c0_i32 = arith.constant 0 : i32
    %c0_i32_0 = arith.constant 0 : i32
    %c0_i32_1 = arith.constant 0 : i32
    return %c0_i32, %c0_i32_0 : i32, i32
  }
  func.func @transform_7(%arg0: i32, %arg1: i32) -> (i32, i32) {
    %c0_i32 = arith.constant 0 : i32
    %c0_i32_0 = arith.constant 0 : i32
    return %arg0, %c0_i32 : i32, i32
  }
  func.func @transform_8(%arg0: i32, %arg1: i32) -> (i32, i32) {
    %c0_i32 = arith.constant 0 : i32
    return %arg0, %arg1 : i32, i32
  }
  func.func @transform_9(%arg0: i32, %arg1: i32) -> (i32, i32) {
    %c0_i32 = arith.constant 0 : i32
    %c0_i32_0 = arith.constant 0 : i32
    return %arg0, %c0_i32 : i32, i32
  }
}

</mosaic_0001>

<llo_original>
// kernel: tpu_custom_call.1
$region0: #{tpu_custom_call.1}
  #allocation0 [shape = 'u32[]', space=smem, size = 0x4, offset = 0x4, fixed_abs, tag = 'smem constant byte address 0x4 - core index']
  #allocation1 [shape = 'u32[144,128]{1,0:T(1,128)}', space=vmem, size = 0x12000, scoped, tag = 'internal scratch']
  #allocation2 [shape = 'f32[16,32]{1,0:T(8,128)}', space=vmem, size = 0x2000, scoped, tag = 'scratch operand']
  %s0 = inlined_call_operand.vmem [shape: f32[16,32], index: 0, kind: input, shape index: {}]
  %s1 = inlined_call_operand.vmem [shape: f32[32,128], index: 1, kind: input, shape index: {}]
  %s2 = inlined_call_operand.vmem [shape: f32[1,128], index: 2, kind: input, shape index: {}]
  %s3 = inlined_call_operand.vmem [shape: f32[128,32], index: 3, kind: input, shape index: {}]
  %s4 = inlined_call_operand.vmem [shape: f32[1,32], index: 4, kind: input, shape index: {}]
  %s5 = inlined_call_operand.vmem [shape: f32[1,32], index: 5, kind: input, shape index: {}]
  %s6 = inlined_call_operand.vmem [shape: f32[1,32], index: 6, kind: input, shape index: {}]
  %s7 = inlined_call_operand.hbm [shape: f32[16,32], index: 7, kind: output, shape index: {0}]
  %s8 = inlined_call_operand.hbm [shape: f32[16,128], index: 8, kind: output, shape index: {1}]
  %s9 = inlined_call_operand.hbm [shape: f32[16,32], index: 9, kind: output, shape index: {2}]
  %10 = xla_tuple %s7, %s8, %s9
  %s11 = sld [smem:[#allocation0]]
  $region62: #{tpu_custom_call.1} parent=0
    _
  %s13 = ssub.s32 1, %s11
  %s14 = scalar_select 0, %s13, %s11
  $region1: #{tpu_custom_call.1} parent=0
    #allocation3 [shape = 'u8[8192]{0}', space=vmem, size = 0x2000, scoped, tag = 'output window, operand 0, single buffered']
    #allocation4 [shape = 's32[1]{0}', space=sflag, size = 0x4, scoped, tag = 'scoped memory for tpu_custom_call.1']
    #allocation5 [shape = 'u8[8192]{0}', space=vmem, size = 0x2000, scoped, tag = 'output window, operand 1, single buffered']
    #allocation6 [shape = 's32[1]{0}', space=sflag, size = 0x4, scoped, tag = 'scoped memory for tpu_custom_call.1']
    #allocation7 [shape = 'u8[8192]{0}', space=vmem, size = 0x2000, scoped, tag = 'output window, operand 2, single buffered']
    %15 = vsyncpa [#allocation4], 0
    %16 = vsyncpa [#allocation6], 0
    // Predicated region
    $region2: #{tpu_custom_call.1} parent=1 // pred_check
      _
    $region3: #{tpu_custom_call.1} parent=1 // pred_check_branch
      %18 = sbr.rel (0) target = $region5
    $region4: #{tpu_custom_call.1} parent=1 // pred_region
      _
    $region5: #{tpu_custom_call.1} parent=1 // pred_fallthru
      _
    // Predicated region
    $region6: #{tpu_custom_call.1} parent=1 // pred_check
      _
    $region7: #{tpu_custom_call.1} parent=1 // pred_check_branch
      %20 = sbr.rel (0) target = $region9
    $region8: #{tpu_custom_call.1} parent=1 // pred_region
      _
    $region9: #{tpu_custom_call.1} parent=1 // pred_fallthru
      _
    // Predicated region
    $region10: #{tpu_custom_call.1} parent=1 // pred_check
      _
    $region11: #{tpu_custom_call.1} parent=1 // pred_check_branch
      %22 = sbr.rel (0) target = $region13
    $region12: #{tpu_custom_call.1} parent=1 // pred_region
      _
    $region13: #{tpu_custom_call.1} parent=1 // pred_fallthru
      _
    // Predicated region
    $region14: #{tpu_custom_call.1} parent=1 // pred_check
      _
    $region15: #{tpu_custom_call.1} parent=1 // pred_check_branch
      %24 = sbr.rel (0) target = $region17
    $region16: #{tpu_custom_call.1} parent=1 // pred_region
      _
    $region17: #{tpu_custom_call.1} parent=1 // pred_fallthru
      _
    // Predicated region
    $region18: #{tpu_custom_call.1} parent=1 // pred_check
      _
    $region19: #{tpu_custom_call.1} parent=1 // pred_check_branch
      %26 = sbr.rel (0) target = $region21
    $region20: #{tpu_custom_call.1} parent=1 // pred_region
      _
    $region21: #{tpu_custom_call.1} parent=1 // pred_fallthru
      _
    // Predicated region
    $region22: #{tpu_custom_call.1} parent=1 // pred_check
      _
    $region23: #{tpu_custom_call.1} parent=1 // pred_check_branch
      %28 = sbr.rel (0) target = $region25
    $region24: #{tpu_custom_call.1} parent=1 // pred_region
      _
    $region25: #{tpu_custom_call.1} parent=1 // pred_fallthru
      _
    // Predicated region
    $region26: #{tpu_custom_call.1} parent=1 // pred_check
      _
    $region27: #{tpu_custom_call.1} parent=1 // pred_check_branch
      %30 = sbr.rel (0) target = $region29
    $region28: #{tpu_custom_call.1} parent=1 // pred_region
      _
    $region29: #{tpu_custom_call.1} parent=1 // pred_fallthru
      _
    %p31 = scmp.eq.s32.totalorder 0, 0
    // Predicated region
    $region30: #{tpu_custom_call.1} parent=1 // pred_check
      %p32 = pneg %p31
    $region31: #{tpu_custom_call.1} parent=1 // pred_check_branch
      %34 = sbr.rel (%p32) target = $region33
    $region32: #{tpu_custom_call.1} parent=1 // pred_region
      %vm35 = vcmask 261120
      %36 = vst.msk [vmem:[#allocation2] sm:$0xff] %vm35, 0.0
      %37 = vst.msk [vmem:[#allocation2 + $0x8] sm:$0xff] %vm35, 0.0
    $region33: #{tpu_custom_call.1} parent=1 // pred_fallthru
      _
    %v38 = vld [vmem:[%s0] sm:$0xff]
    %v39 = vld [vmem:[%s0 + $0x8] sm:$0xff]
    %v40 = vld [vmem:[%s1] sm:$0xff]
    %v41 = vld [vmem:[%s1 + $0x8] sm:$0xff]
    %v42 = vld [vmem:[%s1 + $0x10] sm:$0xff]
    %v43 = vld [vmem:[%s1 + $0x18] sm:$0xff]
    %v44 = vld [vmem:[%s2] sm:$0x1]
    %v46 = vlaneseq
    %v47 = vshrl.u32 %v46, 7
    %v48 = vsub.s32 0, %v47
    %v49 = vrot.slane %v44, %v48
    %vm51 = vcmask 261120
    %v53 = vsel %vm51, %v38, 0
    %v56 = vsel %vm51, %v39, 0
    %58 = vmatprep.subr.mxu0 0.0
    %59 = vmatpush1.msra.mxu0 %v40
    %60 = vmatprep.subr.mxu0 0.0
    %61 = vmatpush1.msra.mxu0 %v41
    %62 = vmatprep.subr.mxu0 0.0
    %63 = vmatpush1.msra.mxu0 %v42
    %64 = vmatprep.subr.mxu0 0.0
    %65 = vmatpush1.msra.mxu0 %v43
    %66 = vmatprep.subr.mxu0 0.0
    %67 = vmatpush1.msra.mxu0 0.0
    %68 = vmatprep.subr.mxu0 0.0
    %69 = vmatpush1.msra.mxu0 0.0
    %70 = vmatprep.subr.mxu0 0.0
    %71 = vmatpush1.msra.mxu0 0.0
    %72 = vmatprep.subr.mxu0 0.0
    %73 = vmatpush1.msra.mxu0 0.0
    %74 = vmatprep.subr.mxu0 0.0
    %75 = vmatpush1.msra.mxu0 0.0
    %76 = vmatprep.subr.mxu0 0.0
    %77 = vmatpush1.msra.mxu0 0.0
    %78 = vmatprep.subr.mxu0 0.0
    %79 = vmatpush1.msra.mxu0 0.0
    %80 = vmatprep.subr.mxu0 0.0
    %81 = vmatpush1.msra.mxu0 0.0
    %82 = vmatprep.subr.mxu0 0.0
    %83 = vmatpush1.msra.mxu0 0.0
    %84 = vmatprep.subr.mxu0 0.0
    %85 = vmatpush1.msra.mxu0 0.0
    %86 = vmatprep.subr.mxu0 0.0
    %87 = vmatpush1.msra.mxu0 0.0
    %88 = vmatprep.subr.mxu0 0.0
    %89 = vmatpush1.msra.mxu0 0.0
    %90 = vmatprep.subr.mxu0 0.0
    %91 = vmatpush1.msra.mxu0 0.0
    %92 = vmatprep.subr.mxu0 0.0
    %93 = vmatpush1.msra.mxu0 0.0
    %94 = vmatprep.subr.mxu0 0.0
    %95 = vmatpush1.msra.mxu0 0.0
    %96 = vmatprep.subr.mxu0 0.0
    %97 = vmatpush1.msra.mxu0 0.0
    %98 = vmatprep.subr.mxu0 0.0
    %99 = vmatpush1.msra.mxu0 0.0
    %100 = vmatprep.subr.mxu0 0.0
    %101 = vmatpush1.msra.mxu0 0.0
    %102 = vmatprep.subr.mxu0 0.0
    %103 = vmatpush1.msra.mxu0 0.0
    %104 = vmatprep.subr.mxu0 0.0
    %105 = vmatpush1.msra.mxu0 0.0
    %106 = vmatprep.subr.mxu0 0.0
    %107 = vmatpush1.msra.mxu0 0.0
    %108 = vmatprep.subr.mxu0 0.0
    %109 = vmatpush1.msra.mxu0 0.0
    %110 = vmatprep.subr.mxu0 0.0
    %111 = vmatpush1.msra.mxu0 0.0
    %112 = vmatprep.subr.mxu0 0.0
    %113 = vmatpush1.msra.mxu0 0.0
    %114 = vmatprep.subr.mxu0 0.0
    %115 = vmatpush1.msra.mxu0 0.0
    %116 = vmatprep.subr.mxu0 0.0
    %117 = vmatpush1.msra.mxu0 0.0
    %118 = vmatprep.subr.mxu0 0.0
    %119 = vmatpush1.msra.mxu0 0.0
    %120 = vmatprep.subr.mxu0 0.0
    %121 = vmatpush1.msra.mxu0 0.0
    %122 = vmatprep.mubr.f32.mxu0 0.0
    %123 = vmatmul.mubr.f32.gmra.mrb[0].mxu0 %v53
    %v124 = vpop.f32.mrb[0].mxu0
    %v125 = vadd.f32 %v49, %v124
    %v126 = vpop.f32.mrb[0].mxu0
    %127 = vmatprep.mubr.f32.mxu0 0.0
    %128 = vmatmul.mubr.f32.gmra.mrb[0].mxu0 %v56
    %v129 = vpop.f32.mrb[0].mxu0
    %v130 = vadd.f32 %v49, %v129
    %v131 = vpop.f32.mrb[0].mxu0
    %132 = vdwg.mxu0
    %v133 = vmul.f32 %v125, 0.5
    %v134 = vmul.f32 %v130, 0.5
    %v135 = vmul.f32 %v125, 0.70710677
    %v136 = vmul.f32 %v130, 0.70710677
    %v137 = verf.f32.pop %v135
    %v138 = verf.f32.pop %v136
    %v139 = vadd.f32 %v137, 1.0
    %v140 = vadd.f32 %v138, 1.0
    %v141 = vmul.f32 %v133, %v139
    %v142 = vmul.f32 %v134, %v140
    %143 = vst [vmem:[#allocation5] sm:$0xff] %v141
    %144 = vst [vmem:[#allocation5 + $0x8] sm:$0xff] %v142
    %v145 = vld [vmem:[#allocation2] sm:$0xff]
    %v146 = vld [vmem:[#allocation2 + $0x8] sm:$0xff]
    %v147 = vld [vmem:[%s3] sm:$0xff]
    %v148 = vld [vmem:[%s3 + $0x8] sm:$0xff]
    %v149 = vld [vmem:[%s3 + $0x10] sm:$0xff]
    %v150 = vld [vmem:[%s3 + $0x18] sm:$0xff]
    %v151 = vld [vmem:[%s3 + $0x20] sm:$0xff]
    %v152 = vld [vmem:[%s3 + $0x28] sm:$0xff]
    %v153 = vld [vmem:[%s3 + $0x30] sm:$0xff]
    %v154 = vld [vmem:[%s3 + $0x38] sm:$0xff]
    %v155 = vld [vmem:[%s3 + $0x40] sm:$0xff]
    %v156 = vld [vmem:[%s3 + $0x48] sm:$0xff]
    %v157 = vld [vmem:[%s3 + $0x50] sm:$0xff]
    %v158 = vld [vmem:[%s3 + $0x58] sm:$0xff]
    %v159 = vld [vmem:[%s3 + $0x60] sm:$0xff]
    %v160 = vld [vmem:[%s3 + $0x68] sm:$0xff]
    %v161 = vld [vmem:[%s3 + $0x70] sm:$0xff]
    %v162 = vld [vmem:[%s3 + $0x78] sm:$0xff]
    %163 = vmatprep.subr.mxu0 0.0
    %164 = vmatpush1.msra.mxu0 %v147
    %165 = vmatprep.subr.mxu0 0.0
    %166 = vmatpush1.msra.mxu0 %v148
    %167 = vmatprep.subr.mxu0 0.0
    %168 = vmatpush1.msra.mxu0 %v149
    %169 = vmatprep.subr.mxu0 0.0
    %170 = vmatpush1.msra.mxu0 %v150
    %171 = vmatprep.subr.mxu0 0.0
    %172 = vmatpush1.msra.mxu0 %v151
    %173 = vmatprep.subr.mxu0 0.0
    %174 = vmatpush1.msra.mxu0 %v152
    %175 = vmatprep.subr.mxu0 0.0
    %176 = vmatpush1.msra.mxu0 %v153
    %177 = vmatprep.subr.mxu0 0.0
    %178 = vmatpush1.msra.mxu0 %v154
    %179 = vmatprep.subr.mxu0 0.0
    %180 = vmatpush1.msra.mxu0 %v155
    %181 = vmatprep.subr.mxu0 0.0
    %182 = vmatpush1.msra.mxu0 %v156
    %183 = vmatprep.subr.mxu0 0.0
    %184 = vmatpush1.msra.mxu0 %v157
    %185 = vmatprep.subr.mxu0 0.0
    %186 = vmatpush1.msra.mxu0 %v158
    %187 = vmatprep.subr.mxu0 0.0
    %188 = vmatpush1.msra.mxu0 %v159
    %189 = vmatprep.subr.mxu0 0.0
    %190 = vmatpush1.msra.mxu0 %v160
    %191 = vmatprep.subr.mxu0 0.0
    %192 = vmatpush1.msra.mxu0 %v161
    %193 = vmatprep.subr.mxu0 0.0
    %194 = vmatpush1.msra.mxu0 %v162
    %195 = vmatprep.subr.mxu0 0.0
    %196 = vmatpush1.msra.mxu0 0.0
    %197 = vmatprep.subr.mxu0 0.0
    %198 = vmatpush1.msra.mxu0 0.0
    %199 = vmatprep.subr.mxu0 0.0
    %200 = vmatpush1.msra.mxu0 0.0
    %201 = vmatprep.subr.mxu0 0.0
    %202 = vmatpush1.msra.mxu0 0.0
    %203 = vmatprep.subr.mxu0 0.0
    %204 = vmatpush1.msra.mxu0 0.0
    %205 = vmatprep.subr.mxu0 0.0
    %206 = vmatpush1.msra.mxu0 0.0
    %207 = vmatprep.subr.mxu0 0.0
    %208 = vmatpush1.msra.mxu0 0.0
    %209 = vmatprep.subr.mxu0 0.0
    %210 = vmatpush1.msra.mxu0 0.0
    %211 = vmatprep.subr.mxu0 0.0
    %212 = vmatpush1.msra.mxu0 0.0
    %213 = vmatprep.subr.mxu0 0.0
    %214 = vmatpush1.msra.mxu0 0.0
    %215 = vmatprep.subr.mxu0 0.0
    %216 = vmatpush1.msra.mxu0 0.0
    %217 = vmatprep.subr.mxu0 0.0
    %218 = vmatpush1.msra.mxu0 0.0
    %219 = vmatprep.subr.mxu0 0.0
    %220 = vmatpush1.msra.mxu0 0.0
    %221 = vmatprep.subr.mxu0 0.0
    %222 = vmatpush1.msra.mxu0 0.0
    %223 = vmatprep.subr.mxu0 0.0
    %224 = vmatpush1.msra.mxu0 0.0
    %225 = vmatprep.subr.mxu0 0.0
    %226 = vmatpush1.msra.mxu0 0.0
    %227 = vmatprep.mubr.f32.mxu0 0.0
    %228 = vmatmul.mubr.f32.gmra.mrb[0].mxu0 %v141
    %v229 = vpop.f32.mrb[0].mxu0
    %v230 = vadd.f32 0.0, %v229
    %v231 = vpop.f32.mrb[0].mxu0
    %232 = vmatprep.mubr.f32.mxu0 0.0
    %233 = vmatmul.mubr.f32.gmra.mrb[0].mxu0 %v142
    %v234 = vpop.f32.mrb[0].mxu0
    %v235 = vadd.f32 0.0, %v234
    %v236 = vpop.f32.mrb[0].mxu0
    %237 = vdwg.mxu0
    %v238 = vadd.f32 %v145, %v230
    %v239 = vadd.f32 %v146, %v235
    %240 = vst.msk [vmem:[#allocation2] sm:$0xff] %vm51, %v238
    %241 = vst.msk [vmem:[#allocation2 + $0x8] sm:$0xff] %vm51, %v239
    // Predicated region
    $region34: #{tpu_custom_call.1} parent=1 // pred_check
      %p242 = pneg %p31
    $region35: #{tpu_custom_call.1} parent=1 // pred_check_branch
      %244 = sbr.rel (%p242) target = $region37
    $region36: #{tpu_custom_call.1} parent=1 // pred_region
      %v245 = vld [vmem:[#allocation2] sm:$0xff]
      %v246 = vld [vmem:[#allocation2 + $0x8] sm:$0xff]
      %v247 = vld [vmem:[%s4] sm:$0x1]
      %v249 = vlaneseq
      %v250 = vshrl.u32 %v249, 7
      %v251 = vsub.s32 0, %v250
      %v252 = vrot.slane %v247, %v251
      %v254 = vadd.f32 %v245, %v252
      %v255 = vadd.f32 %v246, %v252
      %256 = vst.msk [vmem:[#allocation7] sm:$0xff] %vm51, %v254
      %257 = vst.msk [vmem:[#allocation7 + $0x8] sm:$0xff] %vm51, %v255
      %v258 = vld [vmem:[%s0] sm:$0xff]
      %v259 = vld [vmem:[%s0 + $0x8] sm:$0xff]
      %v260 = vadd.f32 %v254, %v258
      %v261 = vadd.f32 %v255, %v259
      %v262 = vsel %vm51, %v260, 0.0
      %263 = vadd.xlane.f32.xlu0 %v262
      %v264 = vpop.xlane.xlu0 %263
      %v265 = vsel %vm51, %v261, 0.0
      %266 = vadd.xlane.f32.xlu0 %v265
      %v267 = vpop.xlane.xlu0 %266
      %v268 = vrcp.pop 32.0
      %v269 = vmul.f32 %v264, %v268
      %v270 = vmul.f32 %v267, %v268
      %v271 = vsub.f32 %v260, %v269
      %v272 = vsub.f32 %v261, %v270
      %v273 = vmul.f32 %v271, %v271
      %v274 = vmul.f32 %v272, %v272
      %v275 = vsel %vm51, %v273, 0.0
      %276 = vadd.xlane.f32.xlu0 %v275
      %v277 = vpop.xlane.xlu0 %276
      %v278 = vsel %vm51, %v274, 0.0
      %279 = vadd.xlane.f32.xlu0 %v278
      %v280 = vpop.xlane.xlu0 %279
      %v281 = vmul.f32 %v277, %v268
      %v282 = vmul.f32 %v280, %v268
      %v283 = vadd.f32 %v281, 1e-05
      %v284 = vadd.f32 %v282, 1e-05
      %v285 = vrsqrt.pop %v283
      %v286 = vrsqrt.pop %v284
      %v287 = vmul.f32 %v271, %v285
      %v288 = vmul.f32 %v272, %v286
      %v289 = vld [vmem:[%s5] sm:$0x1]
      %v291 = vlaneseq
      %v292 = vshrl.u32 %v291, 7
      %v293 = vsub.s32 0, %v292
      %v294 = vrot.slane %v289, %v293
      %v296 = vmul.f32 %v287, %v294
      %v297 = vmul.f32 %v288, %v294
      %v298 = vld [vmem:[%s6] sm:$0x1]
      %v300 = vlaneseq
      %v301 = vshrl.u32 %v300, 7
      %v302 = vsub.s32 0, %v301
      %v303 = vrot.slane %v298, %v302
      %v305 = vadd.f32 %v296, %v303
      %v306 = vadd.f32 %v297, %v303
      %307 = vst.msk [vmem:[#allocation3] sm:$0xff] %vm51, %v305
      %308 = vst.msk [vmem:[#allocation3 + $0x8] sm:$0xff] %vm51, %v306
    $region37: #{tpu_custom_call.1} parent=1 // pred_fallthru
      _
    // Predicated region
    $region38: #{tpu_custom_call.1} parent=1 // pred_check
      _
    $region39: #{tpu_custom_call.1} parent=1 // pred_check_branch
      %310 = sbr.rel (0) target = $region41
    $region40: #{tpu_custom_call.1} parent=1 // pred_region
      %s312 = ssub.s32 256, 256
      %313 = vsyncadd [#allocation4], %s312
      %s314 = sshll.u32 [#allocation3], 4
      %s315 = int_to_ptr.vmem [resolvable:$true] %s314
      %320 = dma.vmem_to_hbm [thread:$0]  %s315, 256, %s7, [#allocation4], 128, 128, 8
    $region41: #{tpu_custom_call.1} parent=1 // pred_fallthru
      _
    // Predicated region
    $region42: #{tpu_custom_call.1} parent=1 // pred_check
      _
    $region43: #{tpu_custom_call.1} parent=1 // pred_check_branch
      %322 = sbr.rel (0) target = $region45
    $region44: #{tpu_custom_call.1} parent=1 // pred_region
      %s324 = ssub.s32 256, 256
      %325 = vsyncadd [#allocation6], %s324
      %s326 = sshll.u32 [#allocation5], 4
      %s327 = int_to_ptr.vmem [resolvable:$true] %s326
      %332 = dma.vmem_to_hbm [thread:$0]  %s327, 256, %s8, [#allocation6], 128, 128, 8
    $region45: #{tpu_custom_call.1} parent=1 // pred_fallthru
      _
    // Predicated region
    $region46: #{tpu_custom_call.1} parent=1 // pred_check
      _
    $region47: #{tpu_custom_call.1} parent=1 // pred_check_branch
      %334 = sbr.rel (0) target = $region49
    $region48: #{tpu_custom_call.1} parent=1 // pred_region
      %s336 = ssub.s32 256, 256
      %337 = vsyncadd [#allocation6], %s336
      %s338 = sshll.u32 [#allocation7], 4
      %s339 = int_to_ptr.vmem [resolvable:$true] %s338
      %344 = dma.vmem_to_hbm [thread:$0]  %s339, 256, %s9, [#allocation6], 128, 128, 8
    $region49: #{tpu_custom_call.1} parent=1 // pred_fallthru
      _
    // Predicated region
    $region50: #{tpu_custom_call.1} parent=1 // pred_check
      _
    $region51: #{tpu_custom_call.1} parent=1 // pred_check_branch
      %346 = sbr.rel (0) target = $region53
    $region52: #{tpu_custom_call.1} parent=1 // pred_region
      %347 = dma.done [#allocation4], 256
    $region53: #{tpu_custom_call.1} parent=1 // pred_fallthru
      _
    // Predicated region
    $region54: #{tpu_custom_call.1} parent=1 // pred_check
      _
    $region55: #{tpu_custom_call.1} parent=1 // pred_check_branch
      %349 = sbr.rel (0) target = $region57
    $region56: #{tpu_custom_call.1} parent=1 // pred_region
      %350 = dma.done [#allocation6], 256
    $region57: #{tpu_custom_call.1} parent=1 // pred_fallthru
      _
    // Predicated region
    $region58: #{tpu_custom_call.1} parent=1 // pred_check
      _
    $region59: #{tpu_custom_call.1} parent=1 // pred_check_branch
      %352 = sbr.rel (0) target = $region61
    $region60: #{tpu_custom_call.1} parent=1 // pred_region
      %353 = dma.done [#allocation6], 256
    $region61: #{tpu_custom_call.1} parent=1 // pred_fallthru
      _
    %354 = vsyncpa [#allocation4], 1
    %355 = vsyncpa [#allocation6], 1

</llo_original>
